<compile_context>
chip_gen: v7x
topology: tpu7x:2x2x1
jax: 0.10.0
libtpu: 0.0.40
codegen_flags: <defaults>
</compile_context>

<pallas_src>
import functools

import jax
import jax.numpy as jnp
from jax import lax
from jax.experimental import pallas as pl
from jax.experimental.pallas import tpu as pltpu


def _dsconv_kernel(x_ref, dw_ref, pw_ref, b_ref, o_ref, *, W, Cin, Cout, BB, use_mxu):
    """One batch-block per grid step.

    x_ref  : (BB*Cin, HW)     input rows (batch-major, channel-minor), spatial flattened on lanes
    dw_ref : (9, BB*Cin, HW)  per-tap depthwise weights, lane-replicated, boundary-masked
    pw_ref : (Cin, Cout, HW)  lane-replicated pointwise weight planes          [VPU path]
             (Cout, Cin)      raw pointwise weights                             [MXU path]
    b_ref  : (Cout, HW)       lane-replicated fused bias                        [VPU path]
             (Cout, 1)        fused bias                                        [MXU path]
    o_ref  : (BB*Cout, HW)    output rows, lane-dense
    """
    HW = x_ref.shape[1]
    x = x_ref[...].astype(jnp.float32)                       # (BB*Cin, HW), all 8 sublanes used

    # ---- depthwise 3x3, padding=1 ----
    # Boundary masks are folded into dw_ref in the wrapper, so each tap is a plain full-shape
    # VPU multiply-add on a rolled copy of x; the 8 rolls go to the XLU slot.
    acc = x * dw_ref[4]                                       # centre tap (dy=0, dx=0), no roll
    tap = 0
    for dy in (-1, 0, 1):
        for dx in (-1, 0, 1):
            if dy == 0 and dx == 0:
                tap += 1
                continue
            off = dy * W + dx                                 # shifted[r, p] == x[r, p + off]
            shifted = pltpu.roll(x, shift=(-off) % HW, axis=1)
            acc = acc + shifted * dw_ref[tap]
            tap += 1

    # ---- pointwise 1x1 over channels ----
    if use_mxu:
        pw = pw_ref[...].astype(jnp.float32)                  # (Cout, Cin)
        bias = b_ref[...].astype(jnp.float32)                 # (Cout, 1)
        for b in range(BB):
            blk = acc[b * Cin:(b + 1) * Cin, :]
            # TODO(synk): cast MXU operands to bf16 (f32 accumulate) on v6e/v7x when exact f32
            #             parity with the reference is not required (~2-3x MXU throughput).
            out_b = jnp.dot(pw, blk, preferred_element_type=jnp.float32) + bias
            o_ref[b * Cout:(b + 1) * Cout, :] = out_b.astype(o_ref.dtype)
    else:
        bias = b_ref[...].astype(jnp.float32)                 # (Cout, HW), pre-replicated
        for b in range(BB):
            out_b = bias
            base = b * Cin
            for ci in range(Cin):
                # lane-replicated weight plane * one depthwise row; pure VPU work.
                out_b = out_b + pw_ref[ci] * acc[base + ci:base + ci + 1, :]
            o_ref[b * Cout:(b + 1) * Cout, :] = out_b.astype(o_ref.dtype)


def _pick_batch_block(B, Cin, Cout, HW, use_mxu, vmem_budget_bytes=8 << 20):
    """Largest batch block BB (divisor of B) whose working set fits a conservative VMEM budget
    and whose block row counts keep the (8, 128) sublane tiling legal."""
    legal = [bb for bb in range(1, B + 1)
             if B % bb == 0 and (bb == B or ((bb * Cin) % 8 == 0 and (bb * Cout) % 8 == 0))]
    best = legal[0]                                  # smallest legal block as a safe fallback
    for bb in legal:
        # x (double-buffered) + out (double-buffered) + 9 tap planes + pointwise operands.
        words = HW * (2 * bb * Cin + 2 * bb * Cout + 9 * bb * Cin)
        words += Cout * Cin if use_mxu else HW * (Cin * Cout + Cout)
        if 4 * words <= vmem_budget_bytes:
            best = bb
    return best


def depthwise_separable_conv(x_nchw, dw_w, dw_b, pw_w, pw_b):
    """x_nchw: (B, Cin, H, W); weights in PyTorch layouts:
       dw_w: (Cin, 1, 3, 3), dw_b: (Cin,), pw_w: (Cout, Cin, 1, 1), pw_b: (Cout,)"""
    B, Cin, H, W = x_nchw.shape
    Cout = pw_w.shape[0]
    HW = H * W

    # MXU only pays off once the channel contraction is reasonably wide; below that the
    # full-lane VPU MAC loop wins (no MXU push/pop latency, no <2%-utilization systolic pass).
    use_mxu = Cin >= 16 and Cout >= 16

    BB = _pick_batch_block(B, Cin, Cout, HW, use_mxu)

    # ---- free reshape of activations: NCHW -> (B*Cin, H*W), spatial on lanes ----
    x_flat = x_nchw.reshape(B * Cin, HW)

    # ---- depthwise taps: boundary-validity masks folded into lane-replicated weights ----
    yy = jnp.arange(HW, dtype=jnp.int32) // W
    xx = jnp.arange(HW, dtype=jnp.int32) % W
    masks = []
    for dy in (-1, 0, 1):
        for dx in (-1, 0, 1):
            m = jnp.ones((HW,), jnp.float32)
            if dy == -1:
                m = m * (yy >= 1)
            elif dy == 1:
                m = m * (yy <= H - 2)
            if dx == -1:
                m = m * (xx >= 1)
            elif dx == 1:
                m = m * (xx <= W - 2)
            masks.append(m)
    mask = jnp.stack(masks, axis=0)                                          # (9, HW)
    dw_rows = jnp.tile(dw_w.reshape(Cin, 9).astype(jnp.float32), (BB, 1))    # (BB*Cin, 9)
    dw_planes = dw_rows.T[:, :, None] * mask[:, None, :]                     # (9, BB*Cin, HW)

    # ---- pointwise weights + exact fold of the depthwise bias into the pointwise bias ----
    pw_w_k = pw_w.reshape(Cout, Cin).astype(jnp.float32)
    fused_b = jnp.matmul(pw_w_k, dw_b.astype(jnp.float32),
                         precision=lax.Precision.HIGHEST) + pw_b.astype(jnp.float32)
    if use_mxu:
        pw_arg = pw_w_k                                                      # (Cout, Cin)
        b_arg = fused_b.reshape(Cout, 1)
        pw_spec = pl.BlockSpec((Cout, Cin), lambda g: (0, 0))
        b_spec = pl.BlockSpec((Cout, 1), lambda g: (0, 0))
    else:
        pw_arg = jnp.broadcast_to(pw_w_k.T[:, :, None], (Cin, Cout, HW))     # lane-replicated
        b_arg = jnp.broadcast_to(fused_b[:, None], (Cout, HW))
        pw_spec = pl.BlockSpec((Cin, Cout, HW), lambda g: (0, 0, 0))
        b_spec = pl.BlockSpec((Cout, HW), lambda g: (0, 0))

    kernel = functools.partial(_dsconv_kernel, W=W, Cin=Cin, Cout=Cout, BB=BB,
                               use_mxu=use_mxu)

    out_flat = pl.pallas_call(
        kernel,
        out_shape=jax.ShapeDtypeStruct((B * Cout, HW), x_nchw.dtype),
        grid_spec=pltpu.PrefetchScalarGridSpec(
            num_scalar_prefetch=0,
            grid=(B // BB,),
            in_specs=[
                pl.BlockSpec((BB * Cin, HW), lambda g: (g, 0)),
                pl.BlockSpec((9, BB * Cin, HW), lambda g: (0, 0, 0)),
                pw_spec,
                b_spec,
            ],
            out_specs=pl.BlockSpec((BB * Cout, HW), lambda g: (g, 0)),
        ),
        # TODO(synk): use pltpu.CORE_PARALLEL for this axis on v7x (2 TCs/chip).
        compiler_params=pltpu.CompilerParams(
            dimension_semantics=("parallel",)),
    )(x_flat, dw_planes, pw_arg, b_arg)

    # Free reshape back to the PyTorch NCHW output convention.
    return out_flat.reshape(B, Cout, H, W)


def _reference(x_nchw, dw_w, dw_b, pw_w, pw_b):
    """Pure-JAX reference using lax.conv_general_dilated (matches PyTorch Conv2d)."""
    Cin = x_nchw.shape[1]
    dw_out = lax.conv_general_dilated(
        x_nchw, dw_w, window_strides=(1, 1), padding=((1, 1), (1, 1)),
        dimension_numbers=("NCHW", "OIHW", "NCHW"), feature_group_count=Cin,
        precision=lax.Precision.HIGHEST)
    dw_out = dw_out + dw_b.reshape(1, Cin, 1, 1)
    pw_out = lax.conv_general_dilated(
        dw_out, pw_w, window_strides=(1, 1), padding=((0, 0), (0, 0)),
        dimension_numbers=("NCHW", "OIHW", "NCHW"),
        precision=lax.Precision.HIGHEST)
    return pw_out + pw_b.reshape(1, -1, 1, 1)


if __name__ == "__main__":
    B, Cin, Cout, H, W = 2, 4, 8, 16, 16

    key = jax.random.PRNGKey(0)
    k1, k2, k3, k4, k5 = jax.random.split(key, 5)

    x = jax.random.normal(k1, (B, Cin, H, W), dtype=jnp.float32)

    # Deterministic parameter init (uniform, PyTorch-Conv2d-like bounds).
    dw_bound = 1.0 / (3 * 3) ** 0.5          # groups=Cin -> fan_in = 1*3*3
    dw_w = jax.random.uniform(k2, (Cin, 1, 3, 3), jnp.float32, -dw_bound, dw_bound)
    dw_b = jax.random.uniform(k3, (Cin,), jnp.float32, -dw_bound, dw_bound)
    pw_bound = 1.0 / Cin ** 0.5
    pw_w = jax.random.uniform(k4, (Cout, Cin, 1, 1), jnp.float32, -pw_bound, pw_bound)
    pw_b = jax.random.uniform(k5, (Cout,), jnp.float32, -pw_bound, pw_bound)

    out = jax.block_until_ready(depthwise_separable_conv(x, dw_w, dw_b, pw_w, pw_b))
    ref = jax.block_until_ready(_reference(x, dw_w, dw_b, pw_w, pw_b))

    assert out.shape == (B, Cout, H, W)
    assert jnp.allclose(out, ref, atol=1e-5, rtol=1e-5), "mismatch vs reference"

    print("KERNEL_OK")
</pallas_src>

<mosaic_0001>
module attributes {stable_mosaic.version = 11 : i64} {
  func.func @_dsconv_kernel(%arg0: i32, %arg1: memref<8x256xf32, #tpu.memory_space<vmem>>, %arg2: memref<9x8x256xf32, #tpu.memory_space<vmem>>, %arg3: memref<4x8x256xf32, #tpu.memory_space<vmem>>, %arg4: memref<8x256xf32, #tpu.memory_space<vmem>>, %arg5: memref<16x256xf32, #tpu.memory_space<vmem>>) attributes {dimension_semantics = [#tpu.dimension_semantics<parallel>], iteration_bounds = array<i64: 1>, scalar_prefetch = 0 : i64, scratch_operands = 0 : i64, tpu.core_type = #tpu.core_type<tc>, window_params = [{transform_indices = @transform_0, window_bounds = array<i64: 8, 256>}, {pipeline_mode = #tpu.pipeline_mode<synchronous>, transform_indices = @transform_1, window_bounds = array<i64: 9, 8, 256>}, {pipeline_mode = #tpu.pipeline_mode<synchronous>, transform_indices = @transform_2, window_bounds = array<i64: 4, 8, 256>}, {pipeline_mode = #tpu.pipeline_mode<synchronous>, transform_indices = @transform_3, window_bounds = array<i64: 8, 256>}, {transform_indices = @transform_4, window_bounds = array<i64: 16, 256>}]} {
    %c0 = arith.constant 0 : index
    %c0_0 = arith.constant 0 : index
    %0 = vector.load %arg1[%c0, %c0_0] : memref<8x256xf32, #tpu.memory_space<vmem>>, vector<8x256xf32>
    %c4 = arith.constant 4 : index
    %c0_1 = arith.constant 0 : index
    %c0_2 = arith.constant 0 : index
    %1 = vector.load %arg2[%c4, %c0_1, %c0_2] : memref<9x8x256xf32, #tpu.memory_space<vmem>>, vector<1x8x256xf32>
    %2 = vector.shape_cast %1 : vector<1x8x256xf32> to vector<8x256xf32>
    %3 = arith.mulf %0, %2 : vector<8x256xf32>
    %c17_i32 = arith.constant 17 : i32
    %4 = tpu.dynamic_rotate %0 by %c17_i32 dim 1 : vector<8x256xf32>, i32 -> vector<8x256xf32>
    %c0_3 = arith.constant 0 : index
    %c0_4 = arith.constant 0 : index
    %c0_5 = arith.constant 0 : index
    %5 = vector.load %arg2[%c0_3, %c0_4, %c0_5] : memref<9x8x256xf32, #tpu.memory_space<vmem>>, vector<1x8x256xf32>
    %6 = vector.shape_cast %5 : vector<1x8x256xf32> to vector<8x256xf32>
    %7 = arith.mulf %4, %6 : vector<8x256xf32>
    %8 = arith.addf %3, %7 : vector<8x256xf32>
    %c16_i32 = arith.constant 16 : i32
    %9 = tpu.dynamic_rotate %0 by %c16_i32 dim 1 : vector<8x256xf32>, i32 -> vector<8x256xf32>
    %c1 = arith.constant 1 : index
    %c0_6 = arith.constant 0 : index
    %c0_7 = arith.constant 0 : index
    %10 = vector.load %arg2[%c1, %c0_6, %c0_7] : memref<9x8x256xf32, #tpu.memory_space<vmem>>, vector<1x8x256xf32>
    %11 = vector.shape_cast %10 : vector<1x8x256xf32> to vector<8x256xf32>
    %12 = arith.mulf %9, %11 : vector<8x256xf32>
    %13 = arith.addf %8, %12 : vector<8x256xf32>
    %c15_i32 = arith.constant 15 : i32
    %14 = tpu.dynamic_rotate %0 by %c15_i32 dim 1 : vector<8x256xf32>, i32 -> vector<8x256xf32>
    %c2 = arith.constant 2 : index
    %c0_8 = arith.constant 0 : index
    %c0_9 = arith.constant 0 : index
    %15 = vector.load %arg2[%c2, %c0_8, %c0_9] : memref<9x8x256xf32, #tpu.memory_space<vmem>>, vector<1x8x256xf32>
    %16 = vector.shape_cast %15 : vector<1x8x256xf32> to vector<8x256xf32>
    %17 = arith.mulf %14, %16 : vector<8x256xf32>
    %18 = arith.addf %13, %17 : vector<8x256xf32>
    %c1_i32 = arith.constant 1 : i32
    %19 = tpu.dynamic_rotate %0 by %c1_i32 dim 1 : vector<8x256xf32>, i32 -> vector<8x256xf32>
    %c3 = arith.constant 3 : index
    %c0_10 = arith.constant 0 : index
    %c0_11 = arith.constant 0 : index
    %20 = vector.load %arg2[%c3, %c0_10, %c0_11] : memref<9x8x256xf32, #tpu.memory_space<vmem>>, vector<1x8x256xf32>
    %21 = vector.shape_cast %20 : vector<1x8x256xf32> to vector<8x256xf32>
    %22 = arith.mulf %19, %21 : vector<8x256xf32>
    %23 = arith.addf %18, %22 : vector<8x256xf32>
    %c255_i32 = arith.constant 255 : i32
    %24 = tpu.dynamic_rotate %0 by %c255_i32 dim 1 : vector<8x256xf32>, i32 -> vector<8x256xf32>
    %c5 = arith.constant 5 : index
    %c0_12 = arith.constant 0 : index
    %c0_13 = arith.constant 0 : index
    %25 = vector.load %arg2[%c5, %c0_12, %c0_13] : memref<9x8x256xf32, #tpu.memory_space<vmem>>, vector<1x8x256xf32>
    %26 = vector.shape_cast %25 : vector<1x8x256xf32> to vector<8x256xf32>
    %27 = arith.mulf %24, %26 : vector<8x256xf32>
    %28 = arith.addf %23, %27 : vector<8x256xf32>
    %c241_i32 = arith.constant 241 : i32
    %29 = tpu.dynamic_rotate %0 by %c241_i32 dim 1 : vector<8x256xf32>, i32 -> vector<8x256xf32>
    %c6 = arith.constant 6 : index
    %c0_14 = arith.constant 0 : index
    %c0_15 = arith.constant 0 : index
    %30 = vector.load %arg2[%c6, %c0_14, %c0_15] : memref<9x8x256xf32, #tpu.memory_space<vmem>>, vector<1x8x256xf32>
    %31 = vector.shape_cast %30 : vector<1x8x256xf32> to vector<8x256xf32>
    %32 = arith.mulf %29, %31 : vector<8x256xf32>
    %33 = arith.addf %28, %32 : vector<8x256xf32>
    %c240_i32 = arith.constant 240 : i32
    %34 = tpu.dynamic_rotate %0 by %c240_i32 dim 1 : vector<8x256xf32>, i32 -> vector<8x256xf32>
    %c7 = arith.constant 7 : index
    %c0_16 = arith.constant 0 : index
    %c0_17 = arith.constant 0 : index
    %35 = vector.load %arg2[%c7, %c0_16, %c0_17] : memref<9x8x256xf32, #tpu.memory_space<vmem>>, vector<1x8x256xf32>
    %36 = vector.shape_cast %35 : vector<1x8x256xf32> to vector<8x256xf32>
    %37 = arith.mulf %34, %36 : vector<8x256xf32>
    %38 = arith.addf %33, %37 : vector<8x256xf32>
    %c239_i32 = arith.constant 239 : i32
    %39 = tpu.dynamic_rotate %0 by %c239_i32 dim 1 : vector<8x256xf32>, i32 -> vector<8x256xf32>
    %c8 = arith.constant 8 : index
    %c0_18 = arith.constant 0 : index
    %c0_19 = arith.constant 0 : index
    %40 = vector.load %arg2[%c8, %c0_18, %c0_19] : memref<9x8x256xf32, #tpu.memory_space<vmem>>, vector<1x8x256xf32>
    %41 = vector.shape_cast %40 : vector<1x8x256xf32> to vector<8x256xf32>
    %42 = arith.mulf %39, %41 : vector<8x256xf32>
    %43 = arith.addf %38, %42 : vector<8x256xf32>
    %c0_20 = arith.constant 0 : index
    %c0_21 = arith.constant 0 : index
    %44 = vector.load %arg4[%c0_20, %c0_21] : memref<8x256xf32, #tpu.memory_space<vmem>>, vector<8x256xf32>
    %c0_22 = arith.constant 0 : index
    %c0_23 = arith.constant 0 : index
    %c0_24 = arith.constant 0 : index
    %45 = vector.load %arg3[%c0_22, %c0_23, %c0_24] : memref<4x8x256xf32, #tpu.memory_space<vmem>>, vector<1x8x256xf32>
    %46 = vector.shape_cast %45 : vector<1x8x256xf32> to vector<8x256xf32>
    %47 = vector.extract_strided_slice %43 {offsets = [0, 0], sizes = [1, 256], strides = [1, 1]} : vector<8x256xf32> to vector<1x256xf32>
    %48 = vector.broadcast %47 : vector<1x256xf32> to vector<8x256xf32>
    %49 = arith.mulf %46, %48 : vector<8x256xf32>
    %50 = arith.addf %44, %49 : vector<8x256xf32>
    %c1_25 = arith.constant 1 : index
    %c0_26 = arith.constant 0 : index
    %c0_27 = arith.constant 0 : index
    %51 = vector.load %arg3[%c1_25, %c0_26, %c0_27] : memref<4x8x256xf32, #tpu.memory_space<vmem>>, vector<1x8x256xf32>
    %52 = vector.shape_cast %51 : vector<1x8x256xf32> to vector<8x256xf32>
    %53 = vector.extract_strided_slice %43 {offsets = [1, 0], sizes = [1, 256], strides = [1, 1]} : vector<8x256xf32> to vector<1x256xf32>
    %54 = vector.broadcast %53 : vector<1x256xf32> to vector<8x256xf32>
    %55 = arith.mulf %52, %54 : vector<8x256xf32>
    %56 = arith.addf %50, %55 : vector<8x256xf32>
    %c2_28 = arith.constant 2 : index
    %c0_29 = arith.constant 0 : index
    %c0_30 = arith.constant 0 : index
    %57 = vector.load %arg3[%c2_28, %c0_29, %c0_30] : memref<4x8x256xf32, #tpu.memory_space<vmem>>, vector<1x8x256xf32>
    %58 = vector.shape_cast %57 : vector<1x8x256xf32> to vector<8x256xf32>
    %59 = vector.extract_strided_slice %43 {offsets = [2, 0], sizes = [1, 256], strides = [1, 1]} : vector<8x256xf32> to vector<1x256xf32>
    %60 = vector.broadcast %59 : vector<1x256xf32> to vector<8x256xf32>
    %61 = arith.mulf %58, %60 : vector<8x256xf32>
    %62 = arith.addf %56, %61 : vector<8x256xf32>
    %c3_31 = arith.constant 3 : index
    %c0_32 = arith.constant 0 : index
    %c0_33 = arith.constant 0 : index
    %63 = vector.load %arg3[%c3_31, %c0_32, %c0_33] : memref<4x8x256xf32, #tpu.memory_space<vmem>>, vector<1x8x256xf32>
    %64 = vector.shape_cast %63 : vector<1x8x256xf32> to vector<8x256xf32>
    %65 = vector.extract_strided_slice %43 {offsets = [3, 0], sizes = [1, 256], strides = [1, 1]} : vector<8x256xf32> to vector<1x256xf32>
    %66 = vector.broadcast %65 : vector<1x256xf32> to vector<8x256xf32>
    %67 = arith.mulf %64, %66 : vector<8x256xf32>
    %68 = arith.addf %62, %67 : vector<8x256xf32>
    %c0_34 = arith.constant 0 : index
    %c0_35 = arith.constant 0 : index
    %69 = vector.load %arg5[%c0_34, %c0_35] : memref<16x256xf32, #tpu.memory_space<vmem>>, vector<8x256xf32>
    tpu.vector_store %arg5[%c0_34, %c0_35], %68 {strides = array<i32>} : memref<16x256xf32, #tpu.memory_space<vmem>>, vector<8x256xf32>,
    %c0_36 = arith.constant 0 : index
    %c0_37 = arith.constant 0 : index
    %c0_38 = arith.constant 0 : index
    %70 = vector.load %arg3[%c0_36, %c0_37, %c0_38] : memref<4x8x256xf32, #tpu.memory_space<vmem>>, vector<1x8x256xf32>
    %71 = vector.shape_cast %70 : vector<1x8x256xf32> to vector<8x256xf32>
    %72 = vector.extract_strided_slice %43 {offsets = [4, 0], sizes = [1, 256], strides = [1, 1]} : vector<8x256xf32> to vector<1x256xf32>
    %73 = vector.broadcast %72 : vector<1x256xf32> to vector<8x256xf32>
    %74 = arith.mulf %71, %73 : vector<8x256xf32>
    %75 = arith.addf %44, %74 : vector<8x256xf32>
    %c1_39 = arith.constant 1 : index
    %c0_40 = arith.constant 0 : index
    %c0_41 = arith.constant 0 : index
    %76 = vector.load %arg3[%c1_39, %c0_40, %c0_41] : memref<4x8x256xf32, #tpu.memory_space<vmem>>, vector<1x8x256xf32>
    %77 = vector.shape_cast %76 : vector<1x8x256xf32> to vector<8x256xf32>
    %78 = vector.extract_strided_slice %43 {offsets = [5, 0], sizes = [1, 256], strides = [1, 1]} : vector<8x256xf32> to vector<1x256xf32>
    %79 = vector.broadcast %78 : vector<1x256xf32> to vector<8x256xf32>
    %80 = arith.mulf %77, %79 : vector<8x256xf32>
    %81 = arith.addf %75, %80 : vector<8x256xf32>
    %c2_42 = arith.constant 2 : index
    %c0_43 = arith.constant 0 : index
    %c0_44 = arith.constant 0 : index
    %82 = vector.load %arg3[%c2_42, %c0_43, %c0_44] : memref<4x8x256xf32, #tpu.memory_space<vmem>>, vector<1x8x256xf32>
    %83 = vector.shape_cast %82 : vector<1x8x256xf32> to vector<8x256xf32>
    %84 = vector.extract_strided_slice %43 {offsets = [6, 0], sizes = [1, 256], strides = [1, 1]} : vector<8x256xf32> to vector<1x256xf32>
    %85 = vector.broadcast %84 : vector<1x256xf32> to vector<8x256xf32>
    %86 = arith.mulf %83, %85 : vector<8x256xf32>
    %87 = arith.addf %81, %86 : vector<8x256xf32>
    %c3_45 = arith.constant 3 : index
    %c0_46 = arith.constant 0 : index
    %c0_47 = arith.constant 0 : index
    %88 = vector.load %arg3[%c3_45, %c0_46, %c0_47] : memref<4x8x256xf32, #tpu.memory_space<vmem>>, vector<1x8x256xf32>
    %89 = vector.shape_cast %88 : vector<1x8x256xf32> to vector<8x256xf32>
    %90 = vector.extract_strided_slice %43 {offsets = [7, 0], sizes = [1, 256], strides = [1, 1]} : vector<8x256xf32> to vector<1x256xf32>
    %91 = vector.broadcast %90 : vector<1x256xf32> to vector<8x256xf32>
    %92 = arith.mulf %89, %91 : vector<8x256xf32>
    %93 = arith.addf %87, %92 : vector<8x256xf32>
    %c8_48 = arith.constant 8 : index
    %c0_49 = arith.constant 0 : index
    %94 = vector.load %arg5[%c8_48, %c0_49] : memref<16x256xf32, #tpu.memory_space<vmem>>, vector<8x256xf32>
    tpu.vector_store %arg5[%c8_48, %c0_49], %93 {strides = array<i32>} : memref<16x256xf32, #tpu.memory_space<vmem>>, vector<8x256xf32>,
    return
  }
  func.func @transform_0(%arg0: i32) -> (i32, i32) {
    %c0_i32 = arith.constant 0 : i32
    %c0_i32_0 = arith.constant 0 : i32
    return %arg0, %c0_i32 : i32, i32
  }
  func.func @transform_1(%arg0: i32) -> (i32, i32, i32) {
    %c0_i32 = arith.constant 0 : i32
    %c0_i32_0 = arith.constant 0 : i32
    %c0_i32_1 = arith.constant 0 : i32
    %c0_i32_2 = arith.constant 0 : i32
    return %c0_i32, %c0_i32_0, %c0_i32_1 : i32, i32, i32
  }
  func.func @transform_2(%arg0: i32) -> (i32, i32, i32) {
    %c0_i32 = arith.constant 0 : i32
    %c0_i32_0 = arith.constant 0 : i32
    %c0_i32_1 = arith.constant 0 : i32
    %c0_i32_2 = arith.constant 0 : i32
    return %c0_i32, %c0_i32_0, %c0_i32_1 : i32, i32, i32
  }
  func.func @transform_3(%arg0: i32) -> (i32, i32) {
    %c0_i32 = arith.constant 0 : i32
    %c0_i32_0 = arith.constant 0 : i32
    %c0_i32_1 = arith.constant 0 : i32
    return %c0_i32, %c0_i32_0 : i32, i32
  }
  func.func @transform_4(%arg0: i32) -> (i32, i32) {
    %c0_i32 = arith.constant 0 : i32
    %c0_i32_0 = arith.constant 0 : i32
    return %arg0, %c0_i32 : i32, i32
  }
}

</mosaic_0001>

<llo_original>
// kernel: tpu_custom_call.1
$region0: #{tpu_custom_call.1}
  #allocation0 [shape = 'u32[]', space=smem, size = 0x4, offset = 0x4, fixed_abs, tag = 'smem constant byte address 0x4 - core index']
  #allocation1 [shape = 'u32[144,128]{1,0:T(1,128)}', space=vmem, size = 0x12000, scoped, tag = 'internal scratch']
  %s0 = inlined_call_operand.hbm [shape: f32[8,256], index: 0, kind: input, shape index: {}]
  %s1 = inlined_call_operand.hbm [shape: f32[9,8,256], index: 1, kind: input, shape index: {}]
  %s2 = inlined_call_operand.hbm [shape: f32[4,8,256], index: 2, kind: input, shape index: {}]
  %s3 = inlined_call_operand.hbm [shape: f32[8,256], index: 3, kind: input, shape index: {}]
  %s4 = inlined_call_operand.hbm [shape: f32[16,256], index: 4, kind: output, shape index: {}]
  %s5 = sld [smem:[#allocation0]]
  $region42: #{tpu_custom_call.1} parent=0
    _
  %s7 = ssub.s32 1, %s5
  %s8 = scalar_select 0, %s7, %s5
  $region1: #{tpu_custom_call.1} parent=0
    #allocation2 [shape = 'u8[8192]{0}', space=vmem, size = 0x2000, scoped, tag = 'input window, operand 0, single buffered']
    #allocation3 [shape = 's32[1]{0}', space=sflag, size = 0x4, scoped, tag = 'scoped memory for tpu_custom_call.1']
    #allocation4 [shape = 's32[1]{0}', space=sflag, size = 0x4, scoped, tag = 'scoped memory for tpu_custom_call.1']
    #allocation5 [shape = 'u8[73728]{0}', space=vmem, size = 0x12000, scoped, tag = 'input window, operand 1, single buffered']
    #allocation6 [shape = 's32[1]{0}', space=sflag, size = 0x4, scoped, tag = 'scoped memory for tpu_custom_call.1']
    #allocation7 [shape = 'u8[32768]{0}', space=vmem, size = 0x8000, scoped, tag = 'input window, operand 2, single buffered']
    #allocation8 [shape = 'u8[8192]{0}', space=vmem, size = 0x2000, scoped, tag = 'input window, operand 3, single buffered']
    #allocation9 [shape = 's32[1]{0}', space=sflag, size = 0x4, scoped, tag = 'scoped memory for tpu_custom_call.1']
    #allocation10 [shape = 'u8[16384]{0}', space=vmem, size = 0x4000, scoped, tag = 'output window, operand 0, single buffered']
    %9 = vsyncpa [#allocation3], 0
    %10 = vsyncpa [#allocation6], 0
    %11 = vsyncpa [#allocation9], 0
    %12 = vsyncpa [#allocation4], 0
    // Predicated region
    $region2: #{tpu_custom_call.1} parent=1 // pred_check
      _
    $region3: #{tpu_custom_call.1} parent=1 // pred_check_branch
      %14 = sbr.rel (0) target = $region5
    $region4: #{tpu_custom_call.1} parent=1 // pred_region
      %s16 = ssub.s32 256, 256
      %17 = vsyncadd [#allocation3], %s16
      %s19 = sshll.u32 [#allocation2], 4
      %s20 = int_to_ptr.vmem [resolvable:$true] %s19
      %22 = dma.hbm_to_vmem [thread:$0]  %s0, 256, %s20, [#allocation3]
    $region5: #{tpu_custom_call.1} parent=1 // pred_fallthru
      _
    // Predicated region
    $region6: #{tpu_custom_call.1} parent=1 // pred_check
      _
    $region7: #{tpu_custom_call.1} parent=1 // pred_check_branch
      %24 = sbr.rel (0) target = $region9
    $region8: #{tpu_custom_call.1} parent=1 // pred_region
      %s26 = ssub.s32 2304, 2304
      %27 = vsyncadd [#allocation6], %s26
      %s28 = sshll.u32 [#allocation5], 4
      %s29 = int_to_ptr.vmem [resolvable:$true] %s28
      %34 = dma.hbm_to_vmem [thread:$0]  %s1, 2304, %s29, [#allocation6], 256, 256, 16
    $region9: #{tpu_custom_call.1} parent=1 // pred_fallthru
      _
    // Predicated region
    $region10: #{tpu_custom_call.1} parent=1 // pred_check
      _
    $region11: #{tpu_custom_call.1} parent=1 // pred_check_branch
      %36 = sbr.rel (0) target = $region13
    $region12: #{tpu_custom_call.1} parent=1 // pred_region
      %s38 = ssub.s32 1024, 1024
      %39 = vsyncadd [#allocation6], %s38
      %s40 = sshll.u32 [#allocation7], 4
      %s41 = int_to_ptr.vmem [resolvable:$true] %s40
      %46 = dma.hbm_to_vmem [thread:$0]  %s2, 1024, %s41, [#allocation6], 256, 256, 16
    $region13: #{tpu_custom_call.1} parent=1 // pred_fallthru
      _
    // Predicated region
    $region14: #{tpu_custom_call.1} parent=1 // pred_check
      _
    $region15: #{tpu_custom_call.1} parent=1 // pred_check_branch
      %48 = sbr.rel (0) target = $region17
    $region16: #{tpu_custom_call.1} parent=1 // pred_region
      %s50 = ssub.s32 256, 256
      %51 = vsyncadd [#allocation9], %s50
      %s53 = sshll.u32 [#allocation8], 4
      %s54 = int_to_ptr.vmem [resolvable:$true] %s53
      %56 = dma.hbm_to_vmem [thread:$0]  %s3, 256, %s54, [#allocation9]
    $region17: #{tpu_custom_call.1} parent=1 // pred_fallthru
      _
    // Predicated region
    $region18: #{tpu_custom_call.1} parent=1 // pred_check
      _
    $region19: #{tpu_custom_call.1} parent=1 // pred_check_branch
      %58 = sbr.rel (0) target = $region21
    $region20: #{tpu_custom_call.1} parent=1 // pred_region
      %59 = dma.done [#allocation3], 256
    $region21: #{tpu_custom_call.1} parent=1 // pred_fallthru
      _
    // Predicated region
    $region22: #{tpu_custom_call.1} parent=1 // pred_check
      _
    $region23: #{tpu_custom_call.1} parent=1 // pred_check_branch
      %61 = sbr.rel (0) target = $region25
    $region24: #{tpu_custom_call.1} parent=1 // pred_region
      %62 = dma.done [#allocation6], 2304
    $region25: #{tpu_custom_call.1} parent=1 // pred_fallthru
      _
    // Predicated region
    $region26: #{tpu_custom_call.1} parent=1 // pred_check
      _
    $region27: #{tpu_custom_call.1} parent=1 // pred_check_branch
      %64 = sbr.rel (0) target = $region29
    $region28: #{tpu_custom_call.1} parent=1 // pred_region
      %65 = dma.done [#allocation6], 1024
    $region29: #{tpu_custom_call.1} parent=1 // pred_fallthru
      _
    // Predicated region
    $region30: #{tpu_custom_call.1} parent=1 // pred_check
      _
    $region31: #{tpu_custom_call.1} parent=1 // pred_check_branch
      %67 = sbr.rel (0) target = $region33
    $region32: #{tpu_custom_call.1} parent=1 // pred_region
      %68 = dma.done [#allocation9], 256
    $region33: #{tpu_custom_call.1} parent=1 // pred_fallthru
      _
    %v69 = vld [vmem:[#allocation2] sm:$0xff]
    %v70 = vld [vmem:[#allocation2 + $0x8] sm:$0xff]
    %s71 = scalar_lea.vmem [#allocation5], 64
    %v72 = vld [vmem:[%s71] sm:$0xff]
    %v73 = vld [vmem:[%s71 + $0x8] sm:$0xff]
    %v74 = vmul.f32 %v69, %v72
    %v75 = vmul.f32 %v70, %v73
    %76 = vrot.lane.b32.xlu0 %v69, 17
    %v77 = vpop.permute.xlu0 %76
    %78 = vrot.lane.b32.xlu0 %v70, 17
    %v79 = vpop.permute.xlu0 %78
    %v80 = vlaneseq
    %v81 = vand.u32 %v80, 127
    %vm82 = vcmp.lt.s32.totalorder %v81, 17
    %v83 = vsel %vm82, %v77, %v79
    %v84 = vsel %vm82, %v79, %v77
    %v85 = vld [vmem:[#allocation5] sm:$0xff]
    %v86 = vld [vmem:[#allocation5 + $0x8] sm:$0xff]
    %v87 = vmul.f32 %v84, %v85
    %v88 = vmul.f32 %v83, %v86
    %v89 = vadd.f32 %v74, %v87
    %v90 = vadd.f32 %v75, %v88
    %91 = vrot.lane.b32.xlu0 %v69, 16
    %v92 = vpop.permute.xlu0 %91
    %93 = vrot.lane.b32.xlu0 %v70, 16
    %v94 = vpop.permute.xlu0 %93
    %vm95 = vcmp.lt.s32.totalorder %v81, 16
    %v96 = vsel %vm95, %v92, %v94
    %v97 = vsel %vm95, %v94, %v92
    %s98 = scalar_lea.vmem [#allocation5], 16
    %v99 = vld [vmem:[%s98] sm:$0xff]
    %v100 = vld [vmem:[%s98 + $0x8] sm:$0xff]
    %v101 = vmul.f32 %v97, %v99
    %v102 = vmul.f32 %v96, %v100
    %v103 = vadd.f32 %v89, %v101
    %v104 = vadd.f32 %v90, %v102
    %105 = vrot.lane.b32.xlu0 %v69, 15
    %v106 = vpop.permute.xlu0 %105
    %107 = vrot.lane.b32.xlu0 %v70, 15
    %v108 = vpop.permute.xlu0 %107
    %vm109 = vcmp.lt.s32.totalorder %v81, 15
    %v110 = vsel %vm109, %v106, %v108
    %v111 = vsel %vm109, %v108, %v106
    %s112 = scalar_lea.vmem [#allocation5], 32
    %v113 = vld [vmem:[%s112] sm:$0xff]
    %v114 = vld [vmem:[%s112 + $0x8] sm:$0xff]
    %v115 = vmul.f32 %v111, %v113
    %v116 = vmul.f32 %v110, %v114
    %v117 = vadd.f32 %v103, %v115
    %v118 = vadd.f32 %v104, %v116
    %119 = vrot.lane.b32.xlu0 %v69, 1
    %v120 = vpop.permute.xlu0 %119
    %121 = vrot.lane.b32.xlu0 %v70, 1
    %v122 = vpop.permute.xlu0 %121
    %vm123 = vcmp.lt.s32.totalorder %v81, 1
    %v124 = vsel %vm123, %v120, %v122
    %v125 = vsel %vm123, %v122, %v120
    %s126 = scalar_lea.vmem [#allocation5], 48
    %v127 = vld [vmem:[%s126] sm:$0xff]
    %v128 = vld [vmem:[%s126 + $0x8] sm:$0xff]
    %v129 = vmul.f32 %v125, %v127
    %v130 = vmul.f32 %v124, %v128
    %v131 = vadd.f32 %v117, %v129
    %v132 = vadd.f32 %v118, %v130
    %133 = vrot.lane.b32.xlu0 %v69, 127
    %v134 = vpop.permute.xlu0 %133
    %135 = vrot.lane.b32.xlu0 %v70, 127
    %v136 = vpop.permute.xlu0 %135
    %vm137 = vcmp.lt.s32.totalorder %v81, 127
    %v138 = vsel %vm137, %v134, %v136
    %v139 = vsel %vm137, %v136, %v134
    %s140 = scalar_lea.vmem [#allocation5], 80
    %v141 = vld [vmem:[%s140] sm:$0xff]
    %v142 = vld [vmem:[%s140 + $0x8] sm:$0xff]
    %v143 = vmul.f32 %v138, %v141
    %v144 = vmul.f32 %v139, %v142
    %v145 = vadd.f32 %v131, %v143
    %v146 = vadd.f32 %v132, %v144
    %147 = vrot.lane.b32.xlu0 %v69, 113
    %v148 = vpop.permute.xlu0 %147
    %149 = vrot.lane.b32.xlu0 %v70, 113
    %v150 = vpop.permute.xlu0 %149
    %vm151 = vcmp.lt.s32.totalorder %v81, 113
    %v152 = vsel %vm151, %v148, %v150
    %v153 = vsel %vm151, %v150, %v148
    %s154 = scalar_lea.vmem [#allocation5], 96
    %v155 = vld [vmem:[%s154] sm:$0xff]
    %v156 = vld [vmem:[%s154 + $0x8] sm:$0xff]
    %v157 = vmul.f32 %v152, %v155
    %v158 = vmul.f32 %v153, %v156
    %v159 = vadd.f32 %v145, %v157
    %v160 = vadd.f32 %v146, %v158
    %161 = vrot.lane.b32.xlu0 %v69, 112
    %v162 = vpop.permute.xlu0 %161
    %163 = vrot.lane.b32.xlu0 %v70, 112
    %v164 = vpop.permute.xlu0 %163
    %vm165 = vcmp.lt.s32.totalorder %v81, 112
    %v166 = vsel %vm165, %v162, %v164
    %v167 = vsel %vm165, %v164, %v162
    %s168 = scalar_lea.vmem [#allocation5], 112
    %v169 = vld [vmem:[%s168] sm:$0xff]
    %v170 = vld [vmem:[%s168 + $0x8] sm:$0xff]
    %v171 = vmul.f32 %v166, %v169
    %v172 = vmul.f32 %v167, %v170
    %v173 = vadd.f32 %v159, %v171
    %v174 = vadd.f32 %v160, %v172
    %175 = vrot.lane.b32.xlu0 %v69, 111
    %v176 = vpop.permute.xlu0 %175
    %177 = vrot.lane.b32.xlu0 %v70, 111
    %v178 = vpop.permute.xlu0 %177
    %vm179 = vcmp.lt.s32.totalorder %v81, 111
    %v180 = vsel %vm179, %v176, %v178
    %v181 = vsel %vm179, %v178, %v176
    %s182 = scalar_lea.vmem [#allocation5], 128
    %v183 = vld [vmem:[%s182] sm:$0xff]
    %v184 = vld [vmem:[%s182 + $0x8] sm:$0xff]
    %v185 = vmul.f32 %v180, %v183
    %v186 = vmul.f32 %v181, %v184
    %v187 = vadd.f32 %v173, %v185
    %v188 = vadd.f32 %v174, %v186
    %v189 = vld [vmem:[#allocation8] sm:$0xff]
    %v190 = vld [vmem:[#allocation8 + $0x8] sm:$0xff]
    %v191 = vld [vmem:[#allocation7] sm:$0xff]
    %v192 = vld [vmem:[#allocation7 + $0x8] sm:$0xff]
    %v193 = vlaneseq
    %v194 = vshrl.u32 %v193, 7
    %v195 = vsub.s32 0, %v194
    %v196 = vrot.slane %v187, %v195
    %v197 = vlaneseq
    %v198 = vshrl.u32 %v197, 7
    %v199 = vsub.s32 0, %v198
    %v200 = vrot.slane %v188, %v199
    %v201 = vmul.f32 %v191, %v196
    %v202 = vmul.f32 %v192, %v200
    %v203 = vadd.f32 %v189, %v201
    %v204 = vadd.f32 %v190, %v202
    %s205 = scalar_lea.vmem [#allocation7], 16
    %v206 = vld [vmem:[%s205] sm:$0xff]
    %v207 = vld [vmem:[%s205 + $0x8] sm:$0xff]
    %v208 = vlaneseq
    %v209 = vshrl.u32 %v208, 7
    %v210 = vsub.s32 1, %v209
    %v211 = vrot.slane %v187, %v210
    %v212 = vlaneseq
    %v213 = vshrl.u32 %v212, 7
    %v214 = vsub.s32 1, %v213
    %v215 = vrot.slane %v188, %v214
    %v216 = vmul.f32 %v206, %v211
    %v217 = vmul.f32 %v207, %v215
    %v218 = vadd.f32 %v203, %v216
    %v219 = vadd.f32 %v204, %v217
    %s220 = scalar_lea.vmem [#allocation7], 32
    %v221 = vld [vmem:[%s220] sm:$0xff]
    %v222 = vld [vmem:[%s220 + $0x8] sm:$0xff]
    %v223 = vlaneseq
    %v224 = vshrl.u32 %v223, 7
    %v225 = vsub.s32 2, %v224
    %v226 = vrot.slane %v187, %v225
    %v227 = vlaneseq
    %v228 = vshrl.u32 %v227, 7
    %v229 = vsub.s32 2, %v228
    %v230 = vrot.slane %v188, %v229
    %v231 = vmul.f32 %v221, %v226
    %v232 = vmul.f32 %v222, %v230
    %v233 = vadd.f32 %v218, %v231
    %v234 = vadd.f32 %v219, %v232
    %s235 = scalar_lea.vmem [#allocation7], 48
    %v236 = vld [vmem:[%s235] sm:$0xff]
    %v237 = vld [vmem:[%s235 + $0x8] sm:$0xff]
    %v238 = vlaneseq
    %v239 = vshrl.u32 %v238, 7
    %v240 = vsub.s32 3, %v239
    %v241 = vrot.slane %v187, %v240
    %v242 = vlaneseq
    %v243 = vshrl.u32 %v242, 7
    %v244 = vsub.s32 3, %v243
    %v245 = vrot.slane %v188, %v244
    %v246 = vmul.f32 %v236, %v241
    %v247 = vmul.f32 %v237, %v245
    %v248 = vadd.f32 %v233, %v246
    %v249 = vadd.f32 %v234, %v247
    %250 = vst [vmem:[#allocation10] sm:$0xff] %v248
    %251 = vst [vmem:[#allocation10 + $0x8] sm:$0xff] %v249
    %v252 = vld [vmem:[#allocation7] sm:$0xff]
    %v253 = vld [vmem:[#allocation7 + $0x8] sm:$0xff]
    %v254 = vlaneseq
    %v255 = vshrl.u32 %v254, 7
    %v256 = vsub.s32 4, %v255
    %v257 = vrot.slane %v187, %v256
    %v258 = vlaneseq
    %v259 = vshrl.u32 %v258, 7
    %v260 = vsub.s32 4, %v259
    %v261 = vrot.slane %v188, %v260
    %v262 = vmul.f32 %v252, %v257
    %v263 = vmul.f32 %v253, %v261
    %v264 = vadd.f32 %v189, %v262
    %v265 = vadd.f32 %v190, %v263
    %v266 = vld [vmem:[%s205] sm:$0xff]
    %v267 = vld [vmem:[%s205 + $0x8] sm:$0xff]
    %v268 = vlaneseq
    %v269 = vshrl.u32 %v268, 7
    %v270 = vsub.s32 5, %v269
    %v271 = vrot.slane %v187, %v270
    %v272 = vlaneseq
    %v273 = vshrl.u32 %v272, 7
    %v274 = vsub.s32 5, %v273
    %v275 = vrot.slane %v188, %v274
    %v276 = vmul.f32 %v266, %v271
    %v277 = vmul.f32 %v267, %v275
    %v278 = vadd.f32 %v264, %v276
    %v279 = vadd.f32 %v265, %v277
    %v280 = vld [vmem:[%s220] sm:$0xff]
    %v281 = vld [vmem:[%s220 + $0x8] sm:$0xff]
    %v282 = vlaneseq
    %v283 = vshrl.u32 %v282, 7
    %v284 = vsub.s32 6, %v283
    %v285 = vrot.slane %v187, %v284
    %v286 = vlaneseq
    %v287 = vshrl.u32 %v286, 7
    %v288 = vsub.s32 6, %v287
    %v289 = vrot.slane %v188, %v288
    %v290 = vmul.f32 %v280, %v285
    %v291 = vmul.f32 %v281, %v289
    %v292 = vadd.f32 %v278, %v290
    %v293 = vadd.f32 %v279, %v291
    %v294 = vld [vmem:[%s235] sm:$0xff]
    %v295 = vld [vmem:[%s235 + $0x8] sm:$0xff]
    %v296 = vlaneseq
    %v297 = vshrl.u32 %v296, 7
    %v298 = vsub.s32 7, %v297
    %v299 = vrot.slane %v187, %v298
    %v300 = vlaneseq
    %v301 = vshrl.u32 %v300, 7
    %v302 = vsub.s32 7, %v301
    %v303 = vrot.slane %v188, %v302
    %v304 = vmul.f32 %v294, %v299
    %v305 = vmul.f32 %v295, %v303
    %v306 = vadd.f32 %v292, %v304
    %v307 = vadd.f32 %v293, %v305
    %308 = vst [vmem:[#allocation10 + $0x10] sm:$0xff] %v306
    %309 = vst [vmem:[#allocation10 + $0x18] sm:$0xff] %v307
    // Predicated region
    $region34: #{tpu_custom_call.1} parent=1 // pred_check
      _
    $region35: #{tpu_custom_call.1} parent=1 // pred_check_branch
      %311 = sbr.rel (0) target = $region37
    $region36: #{tpu_custom_call.1} parent=1 // pred_region
      %s313 = ssub.s32 512, 512
      %314 = vsyncadd [#allocation4], %s313
      %s315 = sshll.u32 [#allocation10], 4
      %s316 = int_to_ptr.vmem [resolvable:$true] %s315
      %321 = dma.vmem_to_hbm [thread:$0]  %s316, 512, %s4, [#allocation4], 256, 256, 16
    $region37: #{tpu_custom_call.1} parent=1 // pred_fallthru
      _
    // Predicated region
    $region38: #{tpu_custom_call.1} parent=1 // pred_check
      _
    $region39: #{tpu_custom_call.1} parent=1 // pred_check_branch
      %323 = sbr.rel (0) target = $region41
    $region40: #{tpu_custom_call.1} parent=1 // pred_region
      %324 = dma.done [#allocation4], 512
    $region41: #{tpu_custom_call.1} parent=1 // pred_fallthru
      _
    %325 = vsyncpa [#allocation3], 1
    %326 = vsyncpa [#allocation6], 1
    %327 = vsyncpa [#allocation9], 1
    %328 = vsyncpa [#allocation4], 1

</llo_original>
